<compile_context>
chip_gen: v7x
topology: tpu7x:2x2x1
jax: 0.10.0
libtpu: 0.0.40
codegen_flags: <defaults>
</compile_context>

<pallas_src>
import functools
from math import sqrt

import jax
import jax.numpy as jnp
from jax.experimental import pallas as pl
from jax.experimental.pallas import tpu as pltpu


def _vmem_limit_bytes():
    """Physical-VMEM-aware scoped limit with headroom; safe fallback."""
    try:
        cap = int(pltpu.get_tpu_info().vmem_capacity_bytes)
    except Exception:
        cap = 64 * 1024 * 1024  # conservative (v7x-sized) fallback
    # ~100 MiB on 128 MiB chips (v5e/v6e), ~48 MiB on 64 MiB chips (v7x).
    return int(max((cap * 3) // 4, cap - 28 * 1024 * 1024))


def _pick_tile(n, target=256):
    """Largest tile <= target dividing n; prefer 128-aligned, then 16-aligned
    (bf16 sublane packing), then 8-aligned; else the full axis (always legal).
    Callers on v6e with long sequences may pass tq=tk=512 explicitly."""
    if n <= target:
        return n
    for align in (128, 16, 8):
        t = (target // align) * align
        while t >= align:
            if n % t == 0:
                return t
            t -= align
    return n


# ----------------------------------------------------------------------------
# Stage 1: Q/K/V projections, written head-major, computed once per row.
# ----------------------------------------------------------------------------
def _qkv_proj_kernel(x_ref, wq_ref, wk_ref, wv_ref, q_ref, k_ref, v_ref, *,
                     norm_fact):
    # x_ref : (1, tp, dim_q)     rows of x for this (b, i)
    # w*_ref: (1, dim_q, dh)     ONE head's transposed weight block
    # q_ref : (1, 1, tp, dk)     head-major output slot (b, h, i)
    x = x_ref[0]                                              # (tp, dim_q)
    q = jnp.dot(x, wq_ref[0], preferred_element_type=jnp.float32)
    q_ref[0, 0] = (q * norm_fact).astype(q_ref.dtype)         # scale in f32
    k = jnp.dot(x, wk_ref[0], preferred_element_type=jnp.float32)
    k_ref[0, 0] = k.astype(k_ref.dtype)
    v = jnp.dot(x, wv_ref[0], preferred_element_type=jnp.float32)
    v_ref[0, 0] = v.astype(v_ref.dtype)


# ----------------------------------------------------------------------------
# Stage 2: flash attention over head-major projections.
# ----------------------------------------------------------------------------
def _flash_attn_kernel(q_ref, k_ref, v_ref, o_ref, m_scr, l_scr, acc_scr, *,
                       nh, dv, exp_in_bf16):
    # q_ref  : (1, nh, tq, dk)  scaled q, resident across the kv axis
    # k_ref  : (1, nh, tk, dk)
    # v_ref  : (1, nh, tk, dv)
    # o_ref  : (1, tq, dim_v)   merged, lane-dense output block
    # m_scr  : (nh, tq, 1) f32  running max
    # l_scr  : (nh, tq, 1) f32  running denom
    # acc_scr: (nh, tq, dv) f32 running numerator
    ki = pl.program_id(2)
    nk = pl.num_programs(2)

    @pl.when(ki == 0)
    def _init():
        m_scr[...] = jnp.full(m_scr.shape, -jnp.inf, dtype=m_scr.dtype)
        l_scr[...] = jnp.zeros(l_scr.shape, dtype=l_scr.dtype)
        acc_scr[...] = jnp.zeros(acc_scr.shape, dtype=acc_scr.dtype)

    q = q_ref[0]                                              # (nh, tq, dk)
    k = k_ref[0]                                              # (nh, tk, dk)
    v = v_ref[0]                                              # (nh, tk, dv)

    # Batched-over-heads QK^T, contracting last axes (no explicit transpose).
    s = jnp.einsum('hqd,hkd->hqk', q, k,
                   preferred_element_type=jnp.float32)        # (nh, tq, tk)

    m_prev = m_scr[...]                                       # (nh, tq, 1)
    m_new = jnp.maximum(m_prev, jnp.max(s, axis=-1, keepdims=True))
    alpha = jnp.exp(m_prev - m_new)                           # f32
    if exp_in_bf16:
        # bf16 EUP on v6e/v7x; p is cast to the matmul dtype anyway.
        p = jnp.exp((s - m_new).astype(jnp.bfloat16))
    else:
        p = jnp.exp(s - m_new)                                # (nh, tq, tk)

    l_scr[...] = alpha * l_scr[...] + jnp.sum(
        p.astype(jnp.float32), axis=-1, keepdims=True)
    acc_scr[...] = alpha * acc_scr[...] + jnp.einsum(
        'hqk,hkd->hqd', p.astype(v.dtype), v,
        preferred_element_type=jnp.float32)
    m_scr[...] = m_new

    @pl.when(ki == nk - 1)
    def _finalize():
        inv_l = pl.reciprocal(l_scr[...], approx=True)        # (nh, tq, 1)
        out = acc_scr[...] * inv_l                            # (nh, tq, dv)
        # Direct per-head lane-slice stores into the merged output block
        # (no concatenate temporary). Runs once per q tile.
        for h in range(nh):
            o_ref[0, :, h * dv:(h + 1) * dv] = out[h].astype(o_ref.dtype)


def self_attention(x, wq, wk, wv, num_heads, *, tq=None, tk=None):
    """x: (batch, n, dim_q); wq/wk: (dim_k, dim_q); wv: (dim_v, dim_q)
    (PyTorch nn.Linear weight layout, y = x @ W^T). Returns (batch, n, dim_v)."""
    batch, n, dim_q = x.shape
    dim_k = wq.shape[0]
    dim_v = wv.shape[0]
    nh = num_heads
    assert dim_k % nh == 0 and dim_v % nh == 0, \
        "dim_k and dim_v must be multiples of num_heads"
    dk = dim_k // nh
    dv = dim_v // nh
    norm_fact = 1.0 / sqrt(dk)

    tq = _pick_tile(n) if tq is None else tq
    tk = _pick_tile(n) if tk is None else tk
    if n % tq != 0 or n % tk != 0:
        raise ValueError(f"tq/tk must divide n: n={n}, tq={tq}, tk={tk}")
    tp = tq  # projection row-tile

    # nn.Linear computes x @ W^T. Reshape W^T head-major ONCE on the host so
    # each head's weight block is contiguous: (nh, dim_q, dk/dv). The kernels
    # then index heads on the leading axis and never lane-slice mid-vreg.
    wq_h = wq.T.reshape(dim_q, nh, dk).transpose(1, 0, 2)     # (nh, dim_q, dk)
    wk_h = wk.T.reshape(dim_q, nh, dk).transpose(1, 0, 2)     # (nh, dim_q, dk)
    wv_h = wv.T.reshape(dim_q, nh, dv).transpose(1, 0, 2)     # (nh, dim_q, dv)

    vmem_limit = _vmem_limit_bytes()
    in_dtype = x.dtype

    # --- Stage 1: projections (heads innermost so x stays resident and only
    # one small per-head weight block streams per step). ---------------------
    proj_kernel = functools.partial(_qkv_proj_kernel, norm_fact=norm_fact)
    q_hm, k_hm, v_hm = pl.pallas_call(
        proj_kernel,
        out_shape=[
            jax.ShapeDtypeStruct((batch, nh, n, dk), in_dtype),
            jax.ShapeDtypeStruct((batch, nh, n, dk), in_dtype),
            jax.ShapeDtypeStruct((batch, nh, n, dv), in_dtype),
        ],
        grid_spec=pltpu.PrefetchScalarGridSpec(
            num_scalar_prefetch=0,
            grid=(batch, n // tp, nh),
            in_specs=[
                pl.BlockSpec((1, tp, dim_q), lambda b, i, h: (b, i, 0)),
                pl.BlockSpec((1, dim_q, dk), lambda b, i, h: (h, 0, 0)),
                pl.BlockSpec((1, dim_q, dk), lambda b, i, h: (h, 0, 0)),
                pl.BlockSpec((1, dim_q, dv), lambda b, i, h: (h, 0, 0)),
            ],
            out_specs=[
                pl.BlockSpec((1, 1, tp, dk), lambda b, i, h: (b, h, i, 0)),
                pl.BlockSpec((1, 1, tp, dk), lambda b, i, h: (b, h, i, 0)),
                pl.BlockSpec((1, 1, tp, dv), lambda b, i, h: (b, h, i, 0)),
            ],
        ),
        compiler_params=pltpu.CompilerParams(
            dimension_semantics=("parallel", "parallel", "parallel"),
            vmem_limit_bytes=vmem_limit,
        ),
    )(x, wq_h, wk_h, wv_h)

    # --- Stage 2: flash attention over the head-major projections. ----------
    attn_kernel = functools.partial(
        _flash_attn_kernel, nh=nh, dv=dv,
        exp_in_bf16=(in_dtype == jnp.bfloat16))
    out = pl.pallas_call(
        attn_kernel,
        out_shape=jax.ShapeDtypeStruct((batch, n, dim_v), in_dtype),
        grid_spec=pltpu.PrefetchScalarGridSpec(
            num_scalar_prefetch=0,
            grid=(batch, n // tq, n // tk),
            in_specs=[
                pl.BlockSpec((1, nh, tq, dk), lambda b, qi, ki: (b, 0, qi, 0)),
                pl.BlockSpec((1, nh, tk, dk), lambda b, qi, ki: (b, 0, ki, 0)),
                pl.BlockSpec((1, nh, tk, dv), lambda b, qi, ki: (b, 0, ki, 0)),
            ],
            # Lane-dense merged output: last dim is the full dim_v.
            out_specs=pl.BlockSpec((1, tq, dim_v),
                                   lambda b, qi, ki: (b, qi, 0)),
            scratch_shapes=[
                pltpu.VMEM((nh, tq, 1), jnp.float32),   # running max
                pltpu.VMEM((nh, tq, 1), jnp.float32),   # running denom
                pltpu.VMEM((nh, tq, dv), jnp.float32),  # running numerator
            ],
        ),
        compiler_params=pltpu.CompilerParams(
            dimension_semantics=("parallel", "parallel", "arbitrary"),
            vmem_limit_bytes=vmem_limit,
        ),
    )(q_hm, k_hm, v_hm)

    return out


def _reference(x, wq, wk, wv, num_heads):
    batch, n, dim_q = x.shape
    dim_k = wq.shape[0]
    dim_v = wv.shape[0]
    nh = num_heads
    dk = dim_k // nh
    dv = dim_v // nh
    q = (x @ wq.T).reshape(batch, n, nh, dk).transpose(0, 2, 1, 3)
    k = (x @ wk.T).reshape(batch, n, nh, dk).transpose(0, 2, 1, 3)
    v = (x @ wv.T).reshape(batch, n, nh, dv).transpose(0, 2, 1, 3)
    dist = jnp.einsum("bhqd,bhkd->bhqk", q, k) * (1.0 / sqrt(dk))
    dist = jax.nn.softmax(dist, axis=-1)
    att = jnp.einsum("bhqk,bhkd->bhqd", dist, v)
    return att.transpose(0, 2, 1, 3).reshape(batch, n, dim_v)


if __name__ == "__main__":
    # Small, module-consistent shapes: batch=2, seq n=8, dim_q=32,
    # dim_k=32, dim_v=32, num_heads=2 -> head dims dk=dv=16.
    batch, n = 2, 8
    dim_q, dim_k, dim_v, num_heads = 32, 32, 32, 2

    key = jax.random.PRNGKey(0)
    kx, kq, kk, kv = jax.random.split(key, 4)

    x = jax.random.normal(kx, (batch, n, dim_q), dtype=jnp.float32)
    # PyTorch Linear weight layout (out_features, in_features).
    wq = jax.random.normal(kq, (dim_k, dim_q), dtype=jnp.float32) * (1.0 / sqrt(dim_q))
    wk = jax.random.normal(kk, (dim_k, dim_q), dtype=jnp.float32) * (1.0 / sqrt(dim_q))
    wv = jax.random.normal(kv, (dim_v, dim_q), dtype=jnp.float32) * (1.0 / sqrt(dim_q))

    out = self_attention(x, wq, wk, wv, num_heads)
    out = jax.block_until_ready(out)

    ref = _reference(x, wq, wk, wv, num_heads)
    assert out.shape == (batch, n, dim_v)
    # pl.reciprocal(approx=True) in the softmax denominator (EUP path)
    # introduces ~1e-4 relative error vs. the exact reference.
    assert jnp.allclose(out, ref, atol=2e-3, rtol=2e-3)

    print("KERNEL_OK")
</pallas_src>

<mosaic_0001>
module attributes {stable_mosaic.version = 11 : i64} {
  func.func @_qkv_proj_kernel(%arg0: i32, %arg1: i32, %arg2: i32, %arg3: memref<1x8x32xf32, #tpu.memory_space<vmem>>, %arg4: memref<1x32x16xf32, #tpu.memory_space<vmem>>, %arg5: memref<1x32x16xf32, #tpu.memory_space<vmem>>, %arg6: memref<1x32x16xf32, #tpu.memory_space<vmem>>, %arg7: memref<1x1x8x16xf32, #tpu.memory_space<vmem>>, %arg8: memref<1x1x8x16xf32, #tpu.memory_space<vmem>>, %arg9: memref<1x1x8x16xf32, #tpu.memory_space<vmem>>) attributes {dimension_semantics = [#tpu.dimension_semantics<parallel>, #tpu.dimension_semantics<parallel>, #tpu.dimension_semantics<parallel>], iteration_bounds = array<i64: 2, 1, 2>, scalar_prefetch = 0 : i64, scratch_operands = 0 : i64, tpu.core_type = #tpu.core_type<tc>, window_params = [{transform_indices = @transform_0, window_bounds = array<i64: 1, 8, 32>}, {transform_indices = @transform_1, window_bounds = array<i64: 1, 32, 16>}, {transform_indices = @transform_2, window_bounds = array<i64: 1, 32, 16>}, {transform_indices = @transform_3, window_bounds = array<i64: 1, 32, 16>}, {transform_indices = @transform_4, window_bounds = array<i64: 1, 1, 8, 16>}, {transform_indices = @transform_5, window_bounds = array<i64: 1, 1, 8, 16>}, {transform_indices = @transform_6, window_bounds = array<i64: 1, 1, 8, 16>}]} {
    %c0 = arith.constant 0 : index
    %c0_0 = arith.constant 0 : index
    %c0_1 = arith.constant 0 : index
    %0 = vector.load %arg3[%c0, %c0_0, %c0_1] : memref<1x8x32xf32, #tpu.memory_space<vmem>>, vector<1x8x32xf32>
    %1 = vector.shape_cast %0 : vector<1x8x32xf32> to vector<8x32xf32>
    %c0_2 = arith.constant 0 : index
    %c0_3 = arith.constant 0 : index
    %c0_4 = arith.constant 0 : index
    %2 = vector.load %arg4[%c0_2, %c0_3, %c0_4] : memref<1x32x16xf32, #tpu.memory_space<vmem>>, vector<1x32x16xf32>
    %3 = vector.shape_cast %2 : vector<1x32x16xf32> to vector<32x16xf32>
    %cst = arith.constant dense<0.000000e+00> : vector<8x16xf32>
    %4 = tpu.matmul %1, %3, %cst {dimension_numbers = #tpu.dot_dimension_numbers<[1], [0], [0], [1], [0, 0, 1, 1], [], []>} : vector<8x32xf32>, vector<32x16xf32>, vector<8x16xf32> -> vector<8x16xf32>
    %cst_5 = arith.constant 2.500000e-01 : f32
    %5 = vector.broadcast %cst_5 : f32 to vector<8x16xf32>
    %6 = arith.mulf %4, %5 : vector<8x16xf32>
    %c0_6 = arith.constant 0 : index
    %c0_7 = arith.constant 0 : index
    %c0_8 = arith.constant 0 : index
    %c0_9 = arith.constant 0 : index
    %7 = vector.load %arg7[%c0_6, %c0_7, %c0_8, %c0_9] : memref<1x1x8x16xf32, #tpu.memory_space<vmem>>, vector<1x1x8x16xf32>
    %8 = vector.shape_cast %7 : vector<1x1x8x16xf32> to vector<8x16xf32>
    %9 = vector.shape_cast %6 : vector<8x16xf32> to vector<1x1x8x16xf32>
    tpu.vector_store %arg7[%c0_6, %c0_7, %c0_8, %c0_9], %9 {strides = array<i32>} : memref<1x1x8x16xf32, #tpu.memory_space<vmem>>, vector<1x1x8x16xf32>,
    %c0_10 = arith.constant 0 : index
    %c0_11 = arith.constant 0 : index
    %c0_12 = arith.constant 0 : index
    %10 = vector.load %arg5[%c0_10, %c0_11, %c0_12] : memref<1x32x16xf32, #tpu.memory_space<vmem>>, vector<1x32x16xf32>
    %11 = vector.shape_cast %10 : vector<1x32x16xf32> to vector<32x16xf32>
    %cst_13 = arith.constant dense<0.000000e+00> : vector<8x16xf32>
    %12 = tpu.matmul %1, %11, %cst_13 {dimension_numbers = #tpu.dot_dimension_numbers<[1], [0], [0], [1], [0, 0, 1, 1], [], []>} : vector<8x32xf32>, vector<32x16xf32>, vector<8x16xf32> -> vector<8x16xf32>
    %c0_14 = arith.constant 0 : index
    %c0_15 = arith.constant 0 : index
    %c0_16 = arith.constant 0 : index
    %c0_17 = arith.constant 0 : index
    %13 = vector.load %arg8[%c0_14, %c0_15, %c0_16, %c0_17] : memref<1x1x8x16xf32, #tpu.memory_space<vmem>>, vector<1x1x8x16xf32>
    %14 = vector.shape_cast %13 : vector<1x1x8x16xf32> to vector<8x16xf32>
    %15 = vector.shape_cast %12 : vector<8x16xf32> to vector<1x1x8x16xf32>
    tpu.vector_store %arg8[%c0_14, %c0_15, %c0_16, %c0_17], %15 {strides = array<i32>} : memref<1x1x8x16xf32, #tpu.memory_space<vmem>>, vector<1x1x8x16xf32>,
    %c0_18 = arith.constant 0 : index
    %c0_19 = arith.constant 0 : index
    %c0_20 = arith.constant 0 : index
    %16 = vector.load %arg6[%c0_18, %c0_19, %c0_20] : memref<1x32x16xf32, #tpu.memory_space<vmem>>, vector<1x32x16xf32>
    %17 = vector.shape_cast %16 : vector<1x32x16xf32> to vector<32x16xf32>
    %cst_21 = arith.constant dense<0.000000e+00> : vector<8x16xf32>
    %18 = tpu.matmul %1, %17, %cst_21 {dimension_numbers = #tpu.dot_dimension_numbers<[1], [0], [0], [1], [0, 0, 1, 1], [], []>} : vector<8x32xf32>, vector<32x16xf32>, vector<8x16xf32> -> vector<8x16xf32>
    %c0_22 = arith.constant 0 : index
    %c0_23 = arith.constant 0 : index
    %c0_24 = arith.constant 0 : index
    %c0_25 = arith.constant 0 : index
    %19 = vector.load %arg9[%c0_22, %c0_23, %c0_24, %c0_25] : memref<1x1x8x16xf32, #tpu.memory_space<vmem>>, vector<1x1x8x16xf32>
    %20 = vector.shape_cast %19 : vector<1x1x8x16xf32> to vector<8x16xf32>
    %21 = vector.shape_cast %18 : vector<8x16xf32> to vector<1x1x8x16xf32>
    tpu.vector_store %arg9[%c0_22, %c0_23, %c0_24, %c0_25], %21 {strides = array<i32>} : memref<1x1x8x16xf32, #tpu.memory_space<vmem>>, vector<1x1x8x16xf32>,
    return
  }
  func.func @transform_0(%arg0: i32, %arg1: i32, %arg2: i32) -> (i32, i32, i32) {
    %c0_i32 = arith.constant 0 : i32
    %c0_i32_0 = arith.constant 0 : i32
    return %arg0, %arg1, %c0_i32 : i32, i32, i32
  }
  func.func @transform_1(%arg0: i32, %arg1: i32, %arg2: i32) -> (i32, i32, i32) {
    %c0_i32 = arith.constant 0 : i32
    %c0_i32_0 = arith.constant 0 : i32
    %c0_i32_1 = arith.constant 0 : i32
    return %arg2, %c0_i32, %c0_i32_0 : i32, i32, i32
  }
  func.func @transform_2(%arg0: i32, %arg1: i32, %arg2: i32) -> (i32, i32, i32) {
    %c0_i32 = arith.constant 0 : i32
    %c0_i32_0 = arith.constant 0 : i32
    %c0_i32_1 = arith.constant 0 : i32
    return %arg2, %c0_i32, %c0_i32_0 : i32, i32, i32
  }
  func.func @transform_3(%arg0: i32, %arg1: i32, %arg2: i32) -> (i32, i32, i32) {
    %c0_i32 = arith.constant 0 : i32
    %c0_i32_0 = arith.constant 0 : i32
    %c0_i32_1 = arith.constant 0 : i32
    return %arg2, %c0_i32, %c0_i32_0 : i32, i32, i32
  }
  func.func @transform_4(%arg0: i32, %arg1: i32, %arg2: i32) -> (i32, i32, i32, i32) {
    %c0_i32 = arith.constant 0 : i32
    %c0_i32_0 = arith.constant 0 : i32
    return %arg0, %arg2, %arg1, %c0_i32 : i32, i32, i32, i32
  }
  func.func @transform_5(%arg0: i32, %arg1: i32, %arg2: i32) -> (i32, i32, i32, i32) {
    %c0_i32 = arith.constant 0 : i32
    %c0_i32_0 = arith.constant 0 : i32
    return %arg0, %arg2, %arg1, %c0_i32 : i32, i32, i32, i32
  }
  func.func @transform_6(%arg0: i32, %arg1: i32, %arg2: i32) -> (i32, i32, i32, i32) {
    %c0_i32 = arith.constant 0 : i32
    %c0_i32_0 = arith.constant 0 : i32
    return %arg0, %arg2, %arg1, %c0_i32 : i32, i32, i32, i32
  }
}

</mosaic_0001>

<llo_original>
// kernel: tpu_custom_call.1
$region0: #{tpu_custom_call.1}
  #allocation0 [shape = 'u32[]', space=smem, size = 0x4, offset = 0x4, fixed_abs, tag = 'smem constant byte address 0x4 - core index']
  #allocation1 [shape = 'u32[144,128]{1,0:T(1,128)}', space=vmem, size = 0x12000, scoped, tag = 'internal scratch']
  %s0 = inlined_call_operand.vmem [shape: f32[2,8,32], index: 0, kind: input, shape index: {}]
  %s1 = inlined_call_operand.vmem [shape: f32[2,32,16], index: 1, kind: input, shape index: {}]
  %s2 = inlined_call_operand.vmem [shape: f32[2,32,16], index: 2, kind: input, shape index: {}]
  %s3 = inlined_call_operand.vmem [shape: f32[2,32,16], index: 3, kind: input, shape index: {}]
  %s4 = inlined_call_operand.hbm [shape: f32[2,2,8,16], index: 4, kind: output, shape index: {0}]
  %s5 = inlined_call_operand.hbm [shape: f32[2,2,8,16], index: 5, kind: output, shape index: {1}]
  %s6 = inlined_call_operand.hbm [shape: f32[2,2,8,16], index: 6, kind: output, shape index: {2}]
  %7 = xla_tuple %s4, %s5, %s6
  %s8 = sld [smem:[#allocation0]]
  $region65: #{tpu_custom_call.1} parent=0
    _
  %s10 = ssub.s32 1, %s8
  %s11 = scalar_select 0, %s10, %s8
  $region1: #{tpu_custom_call.1} parent=0
    #allocation2 [shape = 'u8[8192]{0}', space=vmem, size = 0x2000, scoped, tag = 'output window, operand 0']
    #allocation3 [shape = 's32[2]{0}', space=sflag, size = 0x8, scoped, tag = 'scoped memory for tpu_custom_call.1']
    #allocation4 [shape = 'u8[8192]{0}', space=vmem, size = 0x2000, scoped, tag = 'output window, operand 1']
    #allocation5 [shape = 's32[2]{0}', space=sflag, size = 0x8, scoped, tag = 'scoped memory for tpu_custom_call.1']
    #allocation6 [shape = 'u8[8192]{0}', space=vmem, size = 0x2000, scoped, tag = 'output window, operand 2']
    %12 = vsyncpa [#allocation3], 0
    %s13 = scalar_lea.sflag [#allocation3], 1
    %14 = vsyncpa %s13, 0
    %15 = vsyncpa [#allocation5], 0
    %s16 = scalar_lea.sflag [#allocation5], 1
    %17 = vsyncpa %s16, 0
    loop: start=0, step=1, limit=6
    $region2: #{tpu_custom_call.1} parent=1 // loop_pre_header
      _
    $region3: #{tpu_custom_call.1} parent=1 // loop_header
      %s19 = sphi 0, %s23
      %p20 = scmp.ge.s32.totalorder %s19, 6
      %s26 = sphi 0, %s45
      %s27 = sphi 0, %s41
      %s28 = sphi 0, %s37
      %s29 = sphi 0, %s26
      %s30 = sphi 0, %s27
      %s31 = sphi 0, %s28
      %s32 = sphi 0, %s29
      %s33 = sphi 0, %s30
      %s34 = sphi 0, %s31
      %s50 = sphi 0, %s52
      %s53 = sphi 0, %s50
      %s54 = sphi 0, %s53
      %s70 = sphi 0, %s54
      %s76 = sphi 0, %s78
      %s79 = sphi 0, %s76
      %s80 = sphi 0, %s79
      %s96 = sphi 0, %s80
      %s102 = sphi 0, %s104
      %s105 = sphi 0, %s102
      %s106 = sphi 0, %s105
      %s122 = sphi 0, %s106
      %s128 = sphi 0, %s130
      %s131 = sphi 0, %s128
      %s132 = sphi 0, %s131
      %s148 = sphi 0, %s132
      %s158 = sphi 0, %s160
      %s161 = sphi 0, %s158
      %s162 = sphi 0, %s161
      %s178 = sphi 0, %s162
      %s188 = sphi 0, %s190
      %s191 = sphi 0, %s188
      %s192 = sphi 0, %s191
      %s208 = sphi 0, %s192
      %s218 = sphi 0, %s220
      %s221 = sphi 0, %s218
      %s222 = sphi 0, %s221
      %s238 = sphi 0, %s222
    $region4: #{tpu_custom_call.1} parent=1 // loop_header_branch
      %22 = sbr.rel (%p20) target = $region8
    $region5: #{tpu_custom_call.1} parent=1 // loop_body
      %s24 = ssub.s32 %s19, 1
      %s25 = ssub.s32 %s19, 2
      %s35 = sadd.s32 1, %s28
      %p36 = scmp.ge.s32.totalorder %s35, 2
      %s37 = scalar_select %p36, 0, %s35
      %s38 = sadd.s32 1, %s27
      %s39 = scalar_select %p36, %s38, %s27
      %p40 = scmp.ge.s32.totalorder %s39, 1
      %s41 = scalar_select %p40, 0, %s39
      %s42 = sadd.s32 1, %s26
      %s43 = scalar_select %p40, %s42, %s26
      %p44 = scmp.ge.s32.totalorder %s43, 2
      %s45 = scalar_select %p44, 0, %s43
      %s46 = ssub.s32 %s26, %s45
      %s47 = ssub.s32 %s27, %s41
      %s48 = sor.u32 %s46, %s47
      %p49 = scmp.eq.s32.totalorder %s48, 0
      %s51 = sadd.s32 %s50, 1
      %s52 = scalar_select %p49, %s50, %s51
      %p55 = pneg %p49
      %p56 = scmp.eq.s32.totalorder %s19, 3
      %p57 = por %p55, %p56
      %p58 = scmp.ne.s32.totalorder %s50, %s53
      %p59 = scmp.eq.s32.totalorder %s19, 0
      %p60 = por %p58, %p59
      %p61 = scmp.ne.s32.totalorder %s50, %s53
      %p62 = scmp.eq.s32.totalorder %s24, 3
      %p63 = por %p61, %p62
      %p64 = scmp.ne.s32.totalorder %s53, %s54
      %p65 = scmp.eq.s32.totalorder %s24, 0
      %p66 = por %p64, %p65
      %p67 = scmp.ne.s32.totalorder %s53, %s54
      %p68 = scmp.eq.s32.totalorder %s25, 3
      %p69 = por %p67, %p68
      %p71 = scmp.ne.s32.totalorder %s54, %s70
      %p72 = scmp.eq.s32.totalorder %s25, 0
      %p73 = por %p71, %p72
      %s74 = ssub.s32 %s28, %s37
      %p75 = scmp.eq.s32.totalorder %s74, 0
      %s77 = sadd.s32 %s76, 1
      %s78 = scalar_select %p75, %s76, %s77
      %p81 = pneg %p75
      %p82 = scmp.eq.s32.totalorder %s19, 3
      %p83 = por %p81, %p82
      %p84 = scmp.ne.s32.totalorder %s76, %s79
      %p85 = scmp.eq.s32.totalorder %s19, 0
      %p86 = por %p84, %p85
      %p87 = scmp.ne.s32.totalorder %s76, %s79
      %p88 = scmp.eq.s32.totalorder %s24, 3
      %p89 = por %p87, %p88
      %p90 = scmp.ne.s32.totalorder %s79, %s80
      %p91 = scmp.eq.s32.totalorder %s24, 0
      %p92 = por %p90, %p91
      %p93 = scmp.ne.s32.totalorder %s79, %s80
      %p94 = scmp.eq.s32.totalorder %s25, 3
      %p95 = por %p93, %p94
      %p97 = scmp.ne.s32.totalorder %s80, %s96
      %p98 = scmp.eq.s32.totalorder %s25, 0
      %p99 = por %p97, %p98
      %s100 = ssub.s32 %s28, %s37
      %p101 = scmp.eq.s32.totalorder %s100, 0
      %s103 = sadd.s32 %s102, 1
      %s104 = scalar_select %p101, %s102, %s103
      %p107 = pneg %p101
      %p108 = scmp.eq.s32.totalorder %s19, 3
      %p109 = por %p107, %p108
      %p110 = scmp.ne.s32.totalorder %s102, %s105
      %p111 = scmp.eq.s32.totalorder %s19, 0
      %p112 = por %p110, %p111
      %p113 = scmp.ne.s32.totalorder %s102, %s105
      %p114 = scmp.eq.s32.totalorder %s24, 3
      %p115 = por %p113, %p114
      %p116 = scmp.ne.s32.totalorder %s105, %s106
      %p117 = scmp.eq.s32.totalorder %s24, 0
      %p118 = por %p116, %p117
      %p119 = scmp.ne.s32.totalorder %s105, %s106
      %p120 = scmp.eq.s32.totalorder %s25, 3
      %p121 = por %p119, %p120
      %p123 = scmp.ne.s32.totalorder %s106, %s122
      %p124 = scmp.eq.s32.totalorder %s25, 0
      %p125 = por %p123, %p124
      %s126 = ssub.s32 %s28, %s37
      %p127 = scmp.eq.s32.totalorder %s126, 0
      %s129 = sadd.s32 %s128, 1
      %s130 = scalar_select %p127, %s128, %s129
      %p133 = pneg %p127
      %p134 = scmp.eq.s32.totalorder %s19, 3
      %p135 = por %p133, %p134
      %p136 = scmp.ne.s32.totalorder %s128, %s131
      %p137 = scmp.eq.s32.totalorder %s19, 0
      %p138 = por %p136, %p137
      %p139 = scmp.ne.s32.totalorder %s128, %s131
      %p140 = scmp.eq.s32.totalorder %s24, 3
      %p141 = por %p139, %p140
      %p142 = scmp.ne.s32.totalorder %s131, %s132
      %p143 = scmp.eq.s32.totalorder %s24, 0
      %p144 = por %p142, %p143
      %p145 = scmp.ne.s32.totalorder %s131, %s132
      %p146 = scmp.eq.s32.totalorder %s25, 3
      %p147 = por %p145, %p146
      %p149 = scmp.ne.s32.totalorder %s132, %s148
      %p150 = scmp.eq.s32.totalorder %s25, 0
      %p151 = por %p149, %p150
      %s152 = ssub.s32 %s26, %s45
      %s153 = ssub.s32 %s28, %s37
      %s154 = sor.u32 %s152, %s153
      %s155 = ssub.s32 %s27, %s41
      %s156 = sor.u32 %s154, %s155
      %p157 = scmp.eq.s32.totalorder %s156, 0
      %s159 = sadd.s32 %s158, 1
      %s160 = scalar_select %p157, %s158, %s159
      %p163 = pneg %p157
      %p164 = scmp.eq.s32.totalorder %s19, 3
      %p165 = por %p163, %p164
      %p166 = scmp.ne.s32.totalorder %s158, %s161
      %p167 = scmp.eq.s32.totalorder %s19, 0
      %p168 = por %p166, %p167
      %p169 = scmp.ne.s32.totalorder %s158, %s161
      %p170 = scmp.eq.s32.totalorder %s24, 3
      %p171 = por %p169, %p170
      %p172 = scmp.ne.s32.totalorder %s161, %s162
      %p173 = scmp.eq.s32.totalorder %s24, 0
      %p174 = por %p172, %p173
      %p175 = scmp.ne.s32.totalorder %s161, %s162
      %p176 = scmp.eq.s32.totalorder %s25, 3
      %p177 = por %p175, %p176
      %p179 = scmp.ne.s32.totalorder %s162, %s178
      %p180 = scmp.eq.s32.totalorder %s25, 0
      %p181 = por %p179, %p180
      %s182 = ssub.s32 %s26, %s45
      %s183 = ssub.s32 %s28, %s37
      %s184 = sor.u32 %s182, %s183
      %s185 = ssub.s32 %s27, %s41
      %s186 = sor.u32 %s184, %s185
      %p187 = scmp.eq.s32.totalorder %s186, 0
      %s189 = sadd.s32 %s188, 1
      %s190 = scalar_select %p187, %s188, %s189
      %p193 = pneg %p187
      %p194 = scmp.eq.s32.totalorder %s19, 3
      %p195 = por %p193, %p194
      %p196 = scmp.ne.s32.totalorder %s188, %s191
      %p197 = scmp.eq.s32.totalorder %s19, 0
      %p198 = por %p196, %p197
      %p199 = scmp.ne.s32.totalorder %s188, %s191
      %p200 = scmp.eq.s32.totalorder %s24, 3
      %p201 = por %p199, %p200
      %p202 = scmp.ne.s32.totalorder %s191, %s192
      %p203 = scmp.eq.s32.totalorder %s24, 0
      %p204 = por %p202, %p203
      %p205 = scmp.ne.s32.totalorder %s191, %s192
      %p206 = scmp.eq.s32.totalorder %s25, 3
      %p207 = por %p205, %p206
      %p209 = scmp.ne.s32.totalorder %s192, %s208
      %p210 = scmp.eq.s32.totalorder %s25, 0
      %p211 = por %p209, %p210
      %s212 = ssub.s32 %s26, %s45
      %s213 = ssub.s32 %s28, %s37
      %s214 = sor.u32 %s212, %s213
      %s215 = ssub.s32 %s27, %s41
      %s216 = sor.u32 %s214, %s215
      %p217 = scmp.eq.s32.totalorder %s216, 0
      %s219 = sadd.s32 %s218, 1
      %s220 = scalar_select %p217, %s218, %s219
      %p223 = pneg %p217
      %p224 = scmp.eq.s32.totalorder %s19, 3
      %p225 = por %p223, %p224
      %p226 = scmp.ne.s32.totalorder %s218, %s221
      %p227 = scmp.eq.s32.totalorder %s19, 0
      %p228 = por %p226, %p227
      %p229 = scmp.ne.s32.totalorder %s218, %s221
      %p230 = scmp.eq.s32.totalorder %s24, 3
      %p231 = por %p229, %p230
      %p232 = scmp.ne.s32.totalorder %s221, %s222
      %p233 = scmp.eq.s32.totalorder %s24, 0
      %p234 = por %p232, %p233
      %p235 = scmp.ne.s32.totalorder %s221, %s222
      %p236 = scmp.eq.s32.totalorder %s25, 3
      %p237 = por %p235, %p236
      %p239 = scmp.ne.s32.totalorder %s222, %s238
      %p240 = scmp.eq.s32.totalorder %s25, 0
      %p241 = por %p239, %p240
      %p242 = scmp.le.s32.totalorder 1, %s19
      %p243 = scmp.lt.s32.totalorder %s19, 5
      %p244 = pnand %p242, %p243
      %p245 = pneg %p244
      // Predicated region
      $region9: #{tpu_custom_call.1} parent=5 // pred_check
        _
      $region10: #{tpu_custom_call.1} parent=5 // pred_check_branch
        %247 = sbr.rel (%p244) target = $region12
      $region11: #{tpu_custom_call.1} parent=5 // pred_region
        %s248 = ssub.s32 %s19, 1
      $region12: #{tpu_custom_call.1} parent=5 // pred_fallthru
        _
      %p249 = scmp.lt.s32.totalorder %s19, 4
      // Predicated region
      $region13: #{tpu_custom_call.1} parent=5 // pred_check
        %p250 = pneg %p249
      $region14: #{tpu_custom_call.1} parent=5 // pred_check_branch
        %252 = sbr.rel (%p250) target = $region16
      $region15: #{tpu_custom_call.1} parent=5 // pred_region
        // Predicated region
        $region17: #{tpu_custom_call.1} parent=15 // pred_check
          %p253 = pneg %p60
        $region18: #{tpu_custom_call.1} parent=15 // pred_check_branch
          %255 = sbr.rel (%p253) target = $region20
        $region19: #{tpu_custom_call.1} parent=15 // pred_region
          %p256 = scmp.lt.s32.totalorder %s26, 1
          %s257 = scalar_select %p256, %s26, 1
          %p258 = scmp.lt.s32.totalorder %s27, 0
          %s259 = scalar_select %p258, %s27, 0
          %s260 = sadd.s32 %s259, %s257
          %s261 = smul.addr %s260, 8
          %s262 = scalar_lea.vmem %s0, %s261
        $region20: #{tpu_custom_call.1} parent=15 // pred_fallthru
          _
        // Predicated region
        $region21: #{tpu_custom_call.1} parent=15 // pred_check
          %p263 = pneg %p86
        $region22: #{tpu_custom_call.1} parent=15 // pred_check_branch
          %265 = sbr.rel (%p263) target = $region24
        $region23: #{tpu_custom_call.1} parent=15 // pred_region
          %p266 = scmp.lt.s32.totalorder %s28, 1
          %s267 = scalar_select %p266, %s28, 1
          %s268 = smul.addr %s267, 4
          %s269 = smul.addr %s268, 8
          %s270 = scalar_lea.vmem %s1, %s269
        $region24: #{tpu_custom_call.1} parent=15 // pred_fallthru
          _
        // Predicated region
        $region25: #{tpu_custom_call.1} parent=15 // pred_check
          %p271 = pneg %p112
        $region26: #{tpu_custom_call.1} parent=15 // pred_check_branch
          %273 = sbr.rel (%p271) target = $region28
        $region27: #{tpu_custom_call.1} parent=15 // pred_region
          %p274 = scmp.lt.s32.totalorder %s28, 1
          %s275 = scalar_select %p274, %s28, 1
          %s276 = smul.addr %s275, 4
          %s277 = smul.addr %s276, 8
          %s278 = scalar_lea.vmem %s2, %s277
        $region28: #{tpu_custom_call.1} parent=15 // pred_fallthru
          _
        // Predicated region
        $region29: #{tpu_custom_call.1} parent=15 // pred_check
          %p279 = pneg %p138
        $region30: #{tpu_custom_call.1} parent=15 // pred_check_branch
          %281 = sbr.rel (%p279) target = $region32
        $region31: #{tpu_custom_call.1} parent=15 // pred_region
          %p282 = scmp.lt.s32.totalorder %s28, 1
          %s283 = scalar_select %p282, %s28, 1
          %s284 = smul.addr %s283, 4
          %s285 = smul.addr %s284, 8
          %s286 = scalar_lea.vmem %s3, %s285
        $region32: #{tpu_custom_call.1} parent=15 // pred_fallthru
          _
      $region16: #{tpu_custom_call.1} parent=5 // pred_fallthru
        _
      %p287 = scmp.le.s32.totalorder 1, %s19
      %p288 = scmp.lt.s32.totalorder %s19, 5
      %p289 = pnand %p287, %p288
      %p290 = pneg %p289
      // Predicated region
      $region33: #{tpu_custom_call.1} parent=5 // pred_check
        _
      $region34: #{tpu_custom_call.1} parent=5 // pred_check_branch
        %292 = sbr.rel (%p289) target = $region36
      $region35: #{tpu_custom_call.1} parent=5 // pred_region
        %s293 = ssub.s32 %s19, 1
        %p294 = scmp.lt.s32.totalorder %s29, 1
        %s295 = scalar_select %p294, %s29, 1
        %p296 = scmp.lt.s32.totalorder %s30, 0
        %s297 = scalar_select %p296, %s30, 0
        %s298 = sadd.s32 %s297, %s295
        %s299 = smul.addr %s298, 8
        %s300 = scalar_lea.vmem %s0, %s299
        %p301 = pneg %p66
        %p302 = pneg %p63
        %p303 = scmp.lt.s32.totalorder %s31, 1
        %s304 = scalar_select %p303, %s31, 1
        %s305 = smul.addr %s304, 4
        %s306 = smul.addr %s305, 8
        %s307 = scalar_lea.vmem %s1, %s306
        %p308 = pneg %p92
        %p309 = pneg %p89
        %p310 = scmp.lt.s32.totalorder %s31, 1
        %s311 = scalar_select %p310, %s31, 1
        %s312 = smul.addr %s311, 4
        %s313 = smul.addr %s312, 8
        %s314 = scalar_lea.vmem %s2, %s313
        %p315 = pneg %p118
        %p316 = pneg %p115
        %p317 = scmp.lt.s32.totalorder %s31, 1
        %s318 = scalar_select %p317, %s31, 1
        %s319 = smul.addr %s318, 4
        %s320 = smul.addr %s319, 8
        %s321 = scalar_lea.vmem %s3, %s320
        %p322 = pneg %p144
        %p323 = pneg %p141
        %p324 = pneg %p174
        %p325 = pneg %p171
        %s326 = sand.u32 %s161, 1
        %s327 = scalar_lea.sflag [#allocation3], %s326
        %s328 = sand.u32 %s161, 1
        %s329 = smul.addr %s328, 8
        %s330 = scalar_lea.vmem [#allocation2], %s329
        %p331 = pneg %p204
        %p332 = pneg %p201
        %s333 = sand.u32 %s24, 1
        %s334 = scalar_lea.sflag [#allocation5], %s333
        %s335 = sand.u32 %s191, 1
        %s336 = smul.addr %s335, 8
        %s337 = scalar_lea.vmem [#allocation4], %s336
        %p338 = pneg %p234
        %p339 = pneg %p231
        %s340 = sand.u32 %s24, 1
        %s341 = scalar_lea.sflag [#allocation5], %s340
        %s342 = sand.u32 %s221, 1
        %s343 = smul.addr %s342, 8
        %s344 = scalar_lea.vmem [#allocation6], %s343
        %p345 = scmp.lt.s32.totalorder %s29, 1
        %s346 = scalar_select %p345, %s29, 1
        %p347 = scmp.lt.s32.totalorder %s30, 0
        %s348 = scalar_select %p347, %s30, 0
        %s349 = sadd.s32 %s348, %s346
        %s350 = smul.addr %s349, 8
        %s351 = scalar_lea.vmem %s0, %s350
        %p352 = scmp.lt.s32.totalorder %s31, 1
        %s353 = scalar_select %p352, %s31, 1
        %s354 = smul.addr %s353, 4
        %s355 = smul.addr %s354, 8
        %s356 = scalar_lea.vmem %s1, %s355
        %p357 = scmp.lt.s32.totalorder %s31, 1
        %s358 = scalar_select %p357, %s31, 1
        %s359 = smul.addr %s358, 4
        %s360 = smul.addr %s359, 8
        %s361 = scalar_lea.vmem %s2, %s360
        %p362 = scmp.lt.s32.totalorder %s31, 1
        %s363 = scalar_select %p362, %s31, 1
        %s364 = smul.addr %s363, 4
        %s365 = smul.addr %s364, 8
        %s366 = scalar_lea.vmem %s3, %s365
        %v367 = vld [vmem:[%s351] sm:$0xff]
        %v368 = vld [vmem:[%s356] sm:$0xff]
        %v369 = vld [vmem:[%s356 + $0x8] sm:$0xff]
        %v370 = vld [vmem:[%s356 + $0x10] sm:$0xff]
        %v371 = vld [vmem:[%s356 + $0x18] sm:$0xff]
        %vm372 = vcmask 261120
        %v374 = vsel %vm372, %v367, 0
        %376 = vmatprep.subr.mxu0 0.0
        %377 = vmatpush1.msra.mxu0 %v368
        %378 = vmatprep.subr.mxu0 0.0
        %379 = vmatpush1.msra.mxu0 %v369
        %380 = vmatprep.subr.mxu0 0.0
        %381 = vmatpush1.msra.mxu0 %v370
        %382 = vmatprep.subr.mxu0 0.0
        %383 = vmatpush1.msra.mxu0 %v371
        %384 = vmatprep.subr.mxu0 0.0
        %385 = vmatpush1.msra.mxu0 0.0
        %386 = vmatprep.subr.mxu0 0.0
        %387 = vmatpush1.msra.mxu0 0.0
        %388 = vmatprep.subr.mxu0 0.0
        %389 = vmatpush1.msra.mxu0 0.0
        %390 = vmatprep.subr.mxu0 0.0
        %391 = vmatpush1.msra.mxu0 0.0
        %392 = vmatprep.subr.mxu0 0.0
        %393 = vmatpush1.msra.mxu0 0.0
        %394 = vmatprep.subr.mxu0 0.0
        %395 = vmatpush1.msra.mxu0 0.0
        %396 = vmatprep.subr.mxu0 0.0
        %397 = vmatpush1.msra.mxu0 0.0
        %398 = vmatprep.subr.mxu0 0.0
        %399 = vmatpush1.msra.mxu0 0.0
        %400 = vmatprep.subr.mxu0 0.0
        %401 = vmatpush1.msra.mxu0 0.0
        %402 = vmatprep.subr.mxu0 0.0
        %403 = vmatpush1.msra.mxu0 0.0
        %404 = vmatprep.subr.mxu0 0.0
        %405 = vmatpush1.msra.mxu0 0.0
        %406 = vmatprep.subr.mxu0 0.0
        %407 = vmatpush1.msra.mxu0 0.0
        %408 = vmatprep.subr.mxu0 0.0
        %409 = vmatpush1.msra.mxu0 0.0
        %410 = vmatprep.subr.mxu0 0.0
        %411 = vmatpush1.msra.mxu0 0.0
        %412 = vmatprep.subr.mxu0 0.0
        %413 = vmatpush1.msra.mxu0 0.0
        %414 = vmatprep.subr.mxu0 0.0
        %415 = vmatpush1.msra.mxu0 0.0
        %416 = vmatprep.subr.mxu0 0.0
        %417 = vmatpush1.msra.mxu0 0.0
        %418 = vmatprep.subr.mxu0 0.0
        %419 = vmatpush1.msra.mxu0 0.0
        %420 = vmatprep.subr.mxu0 0.0
        %421 = vmatpush1.msra.mxu0 0.0
        %422 = vmatprep.subr.mxu0 0.0
        %423 = vmatpush1.msra.mxu0 0.0
        %424 = vmatprep.subr.mxu0 0.0
        %425 = vmatpush1.msra.mxu0 0.0
        %426 = vmatprep.subr.mxu0 0.0
        %427 = vmatpush1.msra.mxu0 0.0
        %428 = vmatprep.subr.mxu0 0.0
        %429 = vmatpush1.msra.mxu0 0.0
        %430 = vmatprep.subr.mxu0 0.0
        %431 = vmatpush1.msra.mxu0 0.0
        %432 = vmatprep.subr.mxu0 0.0
        %433 = vmatpush1.msra.mxu0 0.0
        %434 = vmatprep.subr.mxu0 0.0
        %435 = vmatpush1.msra.mxu0 0.0
        %436 = vmatprep.subr.mxu0 0.0
        %437 = vmatpush1.msra.mxu0 0.0
        %438 = vmatprep.subr.mxu0 0.0
        %439 = vmatpush1.msra.mxu0 0.0
        %440 = vmatprep.mubr.f32.mxu0 0.0
        %441 = vmatmul.mubr.f32.gmra.mrb[0].mxu0 %v374
        %v442 = vpop.f32.mrb[0].mxu0
        %v443 = vadd.f32 0.0, %v442
        %v444 = vpop.f32.mrb[0].mxu0
        %445 = vdwg.mxu0
        %v446 = vmul.f32 %v443, 0.25
        %vm447 = vcmask 130048
        %448 = vst.msk [vmem:[%s330] sm:$0xff] %vm447, %v446
        %v449 = vld [vmem:[%s361] sm:$0xff]
        %v450 = vld [vmem:[%s361 + $0x8] sm:$0xff]
        %v451 = vld [vmem:[%s361 + $0x10] sm:$0xff]
        %v452 = vld [vmem:[%s361 + $0x18] sm:$0xff]
        %453 = vmatprep.subr.mxu0 0.0
        %454 = vmatpush1.msra.mxu0 %v449
        %455 = vmatprep.subr.mxu0 0.0
        %456 = vmatpush1.msra.mxu0 %v450
        %457 = vmatprep.subr.mxu0 0.0
        %458 = vmatpush1.msra.mxu0 %v451
        %459 = vmatprep.subr.mxu0 0.0
        %460 = vmatpush1.msra.mxu0 %v452
        %461 = vmatprep.subr.mxu0 0.0
        %462 = vmatpush1.msra.mxu0 0.0
        %463 = vmatprep.subr.mxu0 0.0
        %464 = vmatpush1.msra.mxu0 0.0
        %465 = vmatprep.subr.mxu0 0.0
        %466 = vmatpush1.msra.mxu0 0.0
        %467 = vmatprep.subr.mxu0 0.0
        %468 = vmatpush1.msra.mxu0 0.0
        %469 = vmatprep.subr.mxu0 0.0
        %470 = vmatpush1.msra.mxu0 0.0
        %471 = vmatprep.subr.mxu0 0.0
        %472 = vmatpush1.msra.mxu0 0.0
        %473 = vmatprep.subr.mxu0 0.0
        %474 = vmatpush1.msra.mxu0 0.0
        %475 = vmatprep.subr.mxu0 0.0
        %476 = vmatpush1.msra.mxu0 0.0
        %477 = vmatprep.subr.mxu0 0.0
        %478 = vmatpush1.msra.mxu0 0.0
        %479 = vmatprep.subr.mxu0 0.0
        %480 = vmatpush1.msra.mxu0 0.0
        %481 = vmatprep.subr.mxu0 0.0
        %482 = vmatpush1.msra.mxu0 0.0
        %483 = vmatprep.subr.mxu0 0.0
        %484 = vmatpush1.msra.mxu0 0.0
        %485 = vmatprep.subr.mxu0 0.0
        %486 = vmatpush1.msra.mxu0 0.0
        %487 = vmatprep.subr.mxu0 0.0
        %488 = vmatpush1.msra.mxu0 0.0
        %489 = vmatprep.subr.mxu0 0.0
        %490 = vmatpush1.msra.mxu0 0.0
        %491 = vmatprep.subr.mxu0 0.0
        %492 = vmatpush1.msra.mxu0 0.0
        %493 = vmatprep.subr.mxu0 0.0
        %494 = vmatpush1.msra.mxu0 0.0
        %495 = vmatprep.subr.mxu0 0.0
        %496 = vmatpush1.msra.mxu0 0.0
        %497 = vmatprep.subr.mxu0 0.0
        %498 = vmatpush1.msra.mxu0 0.0
        %499 = vmatprep.subr.mxu0 0.0
        %500 = vmatpush1.msra.mxu0 0.0
        %501 = vmatprep.subr.mxu0 0.0
        %502 = vmatpush1.msra.mxu0 0.0
        %503 = vmatprep.subr.mxu0 0.0
        %504 = vmatpush1.msra.mxu0 0.0
        %505 = vmatprep.subr.mxu0 0.0
        %506 = vmatpush1.msra.mxu0 0.0
        %507 = vmatprep.subr.mxu0 0.0
        %508 = vmatpush1.msra.mxu0 0.0
        %509 = vmatprep.subr.mxu0 0.0
        %510 = vmatpush1.msra.mxu0 0.0
        %511 = vmatprep.subr.mxu0 0.0
        %512 = vmatpush1.msra.mxu0 0.0
        %513 = vmatprep.subr.mxu0 0.0
        %514 = vmatpush1.msra.mxu0 0.0
        %515 = vmatprep.subr.mxu0 0.0
        %516 = vmatpush1.msra.mxu0 0.0
        %517 = vmatprep.mubr.f32.mxu0 0.0
        %518 = vmatmul.mubr.f32.gmra.mrb[0].mxu0 %v374
        %v519 = vpop.f32.mrb[0].mxu0
        %v520 = vadd.f32 0.0, %v519
        %v521 = vpop.f32.mrb[0].mxu0
        %522 = vdwg.mxu0
        %523 = vst.msk [vmem:[%s337] sm:$0xff] %vm447, %v520
        %v524 = vld [vmem:[%s366] sm:$0xff]
        %v525 = vld [vmem:[%s366 + $0x8] sm:$0xff]
        %v526 = vld [vmem:[%s366 + $0x10] sm:$0xff]
        %v527 = vld [vmem:[%s366 + $0x18] sm:$0xff]
        %528 = vmatprep.subr.mxu0 0.0
        %529 = vmatpush1.msra.mxu0 %v524
        %530 = vmatprep.subr.mxu0 0.0
        %531 = vmatpush1.msra.mxu0 %v525
        %532 = vmatprep.subr.mxu0 0.0
        %533 = vmatpush1.msra.mxu0 %v526
        %534 = vmatprep.subr.mxu0 0.0
        %535 = vmatpush1.msra.mxu0 %v527
        %536 = vmatprep.subr.mxu0 0.0
        %537 = vmatpush1.msra.mxu0 0.0
        %538 = vmatprep.subr.mxu0 0.0
        %539 = vmatpush1.msra.mxu0 0.0
        %540 = vmatprep.subr.mxu0 0.0
        %541 = vmatpush1.msra.mxu0 0.0
        %542 = vmatprep.subr.mxu0 0.0
        %543 = vmatpush1.msra.mxu0 0.0
        %544 = vmatprep.subr.mxu0 0.0
        %545 = vmatpush1.msra.mxu0 0.0
        %546 = vmatprep.subr.mxu0 0.0
        %547 = vmatpush1.msra.mxu0 0.0
        %548 = vmatprep.subr.mxu0 0.0
        %549 = vmatpush1.msra.mxu0 0.0
        %550 = vmatprep.subr.mxu0 0.0
        %551 = vmatpush1.msra.mxu0 0.0
        %552 = vmatprep.subr.mxu0 0.0
        %553 = vmatpush1.msra.mxu0 0.0
        %554 = vmatprep.subr.mxu0 0.0
        %555 = vmatpush1.msra.mxu0 0.0
        %556 = vmatprep.subr.mxu0 0.0
        %557 = vmatpush1.msra.mxu0 0.0
        %558 = vmatprep.subr.mxu0 0.0
        %559 = vmatpush1.msra.mxu0 0.0
        %560 = vmatprep.subr.mxu0 0.0
        %561 = vmatpush1.msra.mxu0 0.0
        %562 = vmatprep.subr.mxu0 0.0
        %563 = vmatpush1.msra.mxu0 0.0
        %564 = vmatprep.subr.mxu0 0.0
        %565 = vmatpush1.msra.mxu0 0.0
        %566 = vmatprep.subr.mxu0 0.0
        %567 = vmatpush1.msra.mxu0 0.0
        %568 = vmatprep.subr.mxu0 0.0
        %569 = vmatpush1.msra.mxu0 0.0
        %570 = vmatprep.subr.mxu0 0.0
        %571 = vmatpush1.msra.mxu0 0.0
        %572 = vmatprep.subr.mxu0 0.0
        %573 = vmatpush1.msra.mxu0 0.0
        %574 = vmatprep.subr.mxu0 0.0
        %575 = vmatpush1.msra.mxu0 0.0
        %576 = vmatprep.subr.mxu0 0.0
        %577 = vmatpush1.msra.mxu0 0.0
        %578 = vmatprep.subr.mxu0 0.0
        %579 = vmatpush1.msra.mxu0 0.0
        %580 = vmatprep.subr.mxu0 0.0
        %581 = vmatpush1.msra.mxu0 0.0
        %582 = vmatprep.subr.mxu0 0.0
        %583 = vmatpush1.msra.mxu0 0.0
        %584 = vmatprep.subr.mxu0 0.0
        %585 = vmatpush1.msra.mxu0 0.0
        %586 = vmatprep.subr.mxu0 0.0
        %587 = vmatpush1.msra.mxu0 0.0
        %588 = vmatprep.subr.mxu0 0.0
        %589 = vmatpush1.msra.mxu0 0.0
        %590 = vmatprep.subr.mxu0 0.0
        %591 = vmatpush1.msra.mxu0 0.0
        %592 = vmatprep.mubr.f32.mxu0 0.0
        %593 = vmatmul.mubr.f32.gmra.mrb[0].mxu0 %v374
        %v594 = vpop.f32.mrb[0].mxu0
        %v595 = vadd.f32 0.0, %v594
        %v596 = vpop.f32.mrb[0].mxu0
        %597 = vdwg.mxu0
        %598 = vst.msk [vmem:[%s344] sm:$0xff] %vm447, %v595
        %s599 = sand.u32 %s161, 1
        %s600 = scalar_lea.sflag [#allocation3], %s599
        %s601 = sand.u32 %s161, 1
        %s602 = smul.addr %s601, 8
        %s603 = scalar_lea.vmem [#allocation2], %s602
        %s604 = sand.u32 %s24, 1
        %s605 = scalar_lea.sflag [#allocation5], %s604
        %s606 = sand.u32 %s191, 1
        %s607 = smul.addr %s606, 8
        %s608 = scalar_lea.vmem [#allocation4], %s607
        %s609 = sand.u32 %s24, 1
        %s610 = scalar_lea.sflag [#allocation5], %s609
        %s611 = sand.u32 %s221, 1
        %s612 = smul.addr %s611, 8
        %s613 = scalar_lea.vmem [#allocation6], %s612
        // Predicated region
        $region37: #{tpu_custom_call.1} parent=35 // pred_check
          %p614 = pneg %p171
        $region38: #{tpu_custom_call.1} parent=35 // pred_check_branch
          %616 = sbr.rel (%p614) target = $region40
        $region39: #{tpu_custom_call.1} parent=35 // pred_region
          %s618 = ssub.s32 128, 128
          %619 = vsyncadd %s600, %s618
          %s620 = sadd.s32 %s30, %s31
          %s621 = smul.addr %s29, 2
          %s622 = sadd.s32 %s620, %s621
          %s623 = smul.addr %s622, 128
          %s624 = scalar_lea.hbm %s4, %s623
          %s626 = sshll.u32 %s603, 4
          %s627 = int_to_ptr.vmem [resolvable:$true] %s626
          %629 = dma.vmem_to_hbm [thread:$0]  %s627, 128, %s624, %s600
        $region40: #{tpu_custom_call.1} parent=35 // pred_fallthru
          _
        // Predicated region
        $region41: #{tpu_custom_call.1} parent=35 // pred_check
          %p630 = pneg %p201
        $region42: #{tpu_custom_call.1} parent=35 // pred_check_branch
          %632 = sbr.rel (%p630) target = $region44
        $region43: #{tpu_custom_call.1} parent=35 // pred_region
          %s634 = ssub.s32 128, 128
          %635 = vsyncadd %s605, %s634
          %s636 = sadd.s32 %s30, %s31
          %s637 = smul.addr %s29, 2
          %s638 = sadd.s32 %s636, %s637
          %s639 = smul.addr %s638, 128
          %s640 = scalar_lea.hbm %s5, %s639
          %s642 = sshll.u32 %s608, 4
          %s643 = int_to_ptr.vmem [resolvable:$true] %s642
          %645 = dma.vmem_to_hbm [thread:$0]  %s643, 128, %s640, %s605
        $region44: #{tpu_custom_call.1} parent=35 // pred_fallthru
          _
        // Predicated region
        $region45: #{tpu_custom_call.1} parent=35 // pred_check
          %p646 = pneg %p231
        $region46: #{tpu_custom_call.1} parent=35 // pred_check_branch
          %648 = sbr.rel (%p646) target = $region48
        $region47: #{tpu_custom_call.1} parent=35 // pred_region
          %s650 = ssub.s32 128, 128
          %651 = vsyncadd %s610, %s650
          %s652 = sadd.s32 %s30, %s31
          %s653 = smul.addr %s29, 2
          %s654 = sadd.s32 %s652, %s653
          %s655 = smul.addr %s654, 128
          %s656 = scalar_lea.hbm %s6, %s655
          %s658 = sshll.u32 %s613, 4
          %s659 = int_to_ptr.vmem [resolvable:$true] %s658
          %661 = dma.vmem_to_hbm [thread:$0]  %s659, 128, %s656, %s610
        $region48: #{tpu_custom_call.1} parent=35 // pred_fallthru
          _
      $region36: #{tpu_custom_call.1} parent=5 // pred_fallthru
        _
      %p662 = scmp.le.s32.totalorder 2, %s19
      // Predicated region
      $region49: #{tpu_custom_call.1} parent=5 // pred_check
        %p663 = pneg %p662
      $region50: #{tpu_custom_call.1} parent=5 // pred_check_branch
        %665 = sbr.rel (%p663) target = $region52
      $region51: #{tpu_custom_call.1} parent=5 // pred_region
        %s666 = ssub.s32 %s19, 2
        // Predicated region
        $region53: #{tpu_custom_call.1} parent=51 // pred_check
          %p667 = pneg %p177
        $region54: #{tpu_custom_call.1} parent=51 // pred_check_branch
          %669 = sbr.rel (%p667) target = $region56
        $region55: #{tpu_custom_call.1} parent=51 // pred_region
          %s670 = sand.u32 %s162, 1
          %s671 = scalar_lea.sflag [#allocation3], %s670
          %s672 = sand.u32 %s162, 1
          %s673 = smul.addr %s672, 8
          %s674 = scalar_lea.vmem [#allocation2], %s673
          %675 = dma.done %s671, 128
        $region56: #{tpu_custom_call.1} parent=51 // pred_fallthru
          _
        // Predicated region
        $region57: #{tpu_custom_call.1} parent=51 // pred_check
          %p676 = pneg %p207
        $region58: #{tpu_custom_call.1} parent=51 // pred_check_branch
          %678 = sbr.rel (%p676) target = $region60
        $region59: #{tpu_custom_call.1} parent=51 // pred_region
          %s679 = sand.u32 %s25, 1
          %s680 = scalar_lea.sflag [#allocation5], %s679
          %s681 = sand.u32 %s192, 1
          %s682 = smul.addr %s681, 8
          %s683 = scalar_lea.vmem [#allocation4], %s682
          %684 = dma.done %s680, 128
        $region60: #{tpu_custom_call.1} parent=51 // pred_fallthru
          _
        // Predicated region
        $region61: #{tpu_custom_call.1} parent=51 // pred_check
          %p685 = pneg %p237
        $region62: #{tpu_custom_call.1} parent=51 // pred_check_branch
          %687 = sbr.rel (%p685) target = $region64
        $region63: #{tpu_custom_call.1} parent=51 // pred_region
          %s688 = sand.u32 %s25, 1
          %s689 = scalar_lea.sflag [#allocation5], %s688
          %s690 = sand.u32 %s222, 1
          %s691 = smul.addr %s690, 8
          %s692 = scalar_lea.vmem [#allocation6], %s691
          %693 = dma.done %s689, 128
        $region64: #{tpu_custom_call.1} parent=51 // pred_fallthru
          _
      $region52: #{tpu_custom_call.1} parent=5 // pred_fallthru
        _
    $region6: #{tpu_custom_call.1} parent=1 // loop_footer
      %s23 = sadd.s32 1, %s19
    $region7: #{tpu_custom_call.1} parent=1 // loop_footer_branch
      %18 = sbr.rel target = $region3
    $region8: #{tpu_custom_call.1} parent=1 // loop_exit
      _
    %694 = vsyncpa [#allocation3], 1
    %s695 = scalar_lea.sflag [#allocation3], 1
    %696 = vsyncpa %s695, 1
    %697 = vsyncpa [#allocation5], 1
    %s698 = scalar_lea.sflag [#allocation5], 1
    %699 = vsyncpa %s698, 1

</llo_original>
